<compile_context>
chip_gen: v6e
topology: v6e:2x2x1
jax: 0.10.0
libtpu: 0.0.40
codegen_flags: <defaults>
</compile_context>

<pallas_src>
import functools
import math

import jax
import jax.numpy as jnp
from jax import lax
from jax.experimental import pallas as pl
from jax.experimental.pallas import tpu as pltpu

NUM_FREQS = 10                     # module default
LANE = 128                         # TPU lane width
MAX_TILE_ROWS = 1024               # rows of 128 lanes per grid step (10 MiB f32 out block)
VMEM_LIMIT_BYTES = 48 * 1024 * 1024  # > v5e's 16 MiB scoped default, < v7x's 64 MiB/TC


def _pe_kernel(num_freqs, reseed_every, rows_per_chunk, x_ref, o_ref):
    """x_ref: (tile_s, LANE); o_ref: (2*num_freqs, tile_s, LANE).

    Term k < num_freqs   -> sin(x * 2**k * pi)
    Term k >= num_freqs  -> cos(x * 2**(k-num_freqs) * pi)

    Chunk-outer / frequency-inner so x and the (s, c) recurrence carries stay in
    a few vregs instead of whole-tile VMEM arrays.
    """
    tile_s = x_ref.shape[0]
    n_chunks = tile_s // rows_per_chunk

    def chunk_body(ci, carry):
        r0 = pl.multiple_of(ci * rows_per_chunk, rows_per_chunk)
        rows = pl.ds(r0, rows_per_chunk)
        x = x_ref[rows, :].astype(jnp.float32)   # compute in f32 even for bf16 inputs
        s = c = None
        for k in range(num_freqs):
            if k % reseed_every == 0:
                # 2**k * fl32(pi): exactly the frequency the PyTorch module uses.
                f = jnp.float32(math.pi * (2.0 ** k))
                z = x * f
                s = jnp.sin(z)
                c = jnp.cos(z)
            else:
                # Double-angle step: (sin, cos)(2z) from (sin, cos)(z).
                s, c = 2.0 * (s * c), 2.0 * (c * c) - 1.0
            o_ref[k, rows, :] = s.astype(o_ref.dtype)
            o_ref[num_freqs + k, rows, :] = c.astype(o_ref.dtype)
        return carry

    lax.fori_loop(0, n_chunks, chunk_body, 0)


def positional_encoding_pallas(x, num_freqs=NUM_FREQS, reseed_every=5, out_dtype=None):
    """x: (B, C, H, W) -> (B, 2*num_freqs*C, H, W) in torch.cat channel order."""
    B, C, H, W = x.shape
    N = C * H * W
    n_terms = 2 * num_freqs
    out_dtype = jnp.dtype(x.dtype) if out_dtype is None else jnp.dtype(out_dtype)

    # bf16 vregs pack 16 rows; use 16-row granules whenever either side is 16-bit.
    sub = 16 if (jnp.dtype(x.dtype).itemsize == 2 or out_dtype.itemsize == 2) else 8

    # Lane-dense (rows, 128) view of the flattened (C,H,W) axis.  No padding (and
    # therefore no output crop copy) whenever N is a multiple of 128.
    xf = x.reshape(B, N)
    pad = (-N) % LANE
    if pad:
        # TODO(synk): for N % 128 != 0 we still pad the input and crop the 20x-sized
        # output (one extra output copy); a masked-store epilogue would remove it.
        xf = jnp.pad(xf, ((0, 0), (0, pad)))
    n_pad = N + pad
    S = n_pad // LANE

    # Fixed large row tile + cdiv grid (ragged last block is masked by Pallas).
    if S < sub:
        tile_s = S                                   # equals the full dim -> allowed
    else:
        tile_s = min(MAX_TILE_ROWS, (S // sub) * sub)
    rows_per_chunk = sub if tile_s % sub == 0 else tile_s
    assert tile_s % rows_per_chunk == 0

    x3 = xf.reshape(B, S, LANE)
    kernel = functools.partial(_pe_kernel, num_freqs, reseed_every, rows_per_chunk)

    out = pl.pallas_call(
        kernel,
        out_shape=jax.ShapeDtypeStruct((B, n_terms, S, LANE), out_dtype),
        grid_spec=pltpu.PrefetchScalarGridSpec(
            num_scalar_prefetch=0,
            grid=(B, pl.cdiv(S, tile_s)),
            in_specs=[
                pl.BlockSpec((None, tile_s, LANE), lambda b, j: (b, j, 0)),
            ],
            # All 2F terms for one tile are produced by a single grid step, so x is
            # read from HBM exactly once per 20 output elements.
            out_specs=pl.BlockSpec(
                (None, n_terms, tile_s, LANE), lambda b, j: (b, 0, j, 0)
            ),
        ),
        compiler_params=pltpu.CompilerParams(
            # Every grid point owns a disjoint output block -> both axes parallel
            # (lets v7x shard the grid across its 2 TensorCores).
            dimension_semantics=("parallel", "parallel"),
            # 20 MiB double-buffered output block at tile_s=1024 exceeds v5e's
            # 16 MiB scoped default; raise it explicitly (safe on all generations).
            vmem_limit_bytes=VMEM_LIMIT_BYTES,
        ),
    )(x3)

    out = out.reshape(B, n_terms, n_pad)
    if pad:
        out = out[:, :, :N]
    # (B, 2F, C*H*W) -> (B, 2F*C, H, W): term-major / channel-minor == torch.cat order.
    return out.reshape(B, n_terms * C, H, W)


def positional_encoding_ref(x, num_freqs=NUM_FREQS):
    freqs = (2.0 ** jnp.arange(num_freqs, dtype=jnp.float32)) * jnp.float32(math.pi)
    outs = [jnp.sin(x * f) for f in freqs] + [jnp.cos(x * f) for f in freqs]
    return jnp.concatenate(outs, axis=1)


if __name__ == "__main__":
    key = jax.random.PRNGKey(0)

    # Primary check (module-typical small shape; exact-fit path: S multiple of 8).
    B, C, H, W = 2, 4, 16, 16
    x = jax.random.normal(key, (B, C, H, W), dtype=jnp.float32)
    out = jax.block_until_ready(positional_encoding_pallas(x))
    ref = positional_encoding_ref(x)
    assert out.shape == (B, 2 * NUM_FREQS * C, H, W), out.shape
    err = float(jnp.max(jnp.abs(out - ref)))
    assert err < 1e-3, err

    # Secondary check: ragged row-tile path (S=18 rows, tile=16, cdiv grid with a
    # masked last block) -- runs without any wrapper-side pad/crop copy.
    x2 = jax.random.normal(key, (2, 4, 24, 24), dtype=jnp.float32)
    out2 = jax.block_until_ready(positional_encoding_pallas(x2))
    ref2 = positional_encoding_ref(x2)
    assert out2.shape == ref2.shape, (out2.shape, ref2.shape)
    err2 = float(jnp.max(jnp.abs(out2 - ref2)))
    assert err2 < 1e-3, err2

    print("KERNEL_OK")
</pallas_src>

<mosaic_0001>
module attributes {stable_mosaic.version = 11 : i64} {
  func.func @_pe_kernel(%arg0: i32, %arg1: i32, %arg2: memref<1x8x128xf32, #tpu.memory_space<vmem>>, %arg3: memref<1x20x8x128xf32, #tpu.memory_space<vmem>>) attributes {dimension_semantics = [#tpu.dimension_semantics<parallel>, #tpu.dimension_semantics<parallel>], iteration_bounds = array<i64: 2, 1>, scalar_prefetch = 0 : i64, scratch_operands = 0 : i64, tpu.core_type = #tpu.core_type<tc>, window_params = [{transform_indices = @transform_0, window_bounds = array<i64: 1, 8, 128>}, {transform_indices = @transform_1, window_bounds = array<i64: 1, 20, 8, 128>}]} {
    %c0_i32 = arith.constant 0 : i32
    %c8_i32 = arith.constant 8 : i32
    %0 = arith.muli %c0_i32, %c8_i32 : i32
    %1 = tpu.assume_multiple %0, 8 : i32
    %c0 = arith.constant 0 : index
    %2 = arith.index_cast %1 : i32 to index
    %c0_0 = arith.constant 0 : index
    %3 = vector.load %arg2[%c0, %2, %c0_0] : memref<1x8x128xf32, #tpu.memory_space<vmem>>, vector<1x8x128xf32>
    %4 = vector.shape_cast %3 : vector<1x8x128xf32> to vector<8x128xf32>
    %cst = arith.constant 3.14159274 : f32
    %5 = vector.broadcast %cst : f32 to vector<8x128xf32>
    %6 = arith.mulf %4, %5 : vector<8x128xf32>
    %7 = math.sin %6 : vector<8x128xf32>
    %8 = math.cos %6 : vector<8x128xf32>
    %c0_1 = arith.constant 0 : index
    %c0_2 = arith.constant 0 : index
    %9 = arith.index_cast %1 : i32 to index
    %c0_3 = arith.constant 0 : index
    %10 = vector.load %arg3[%c0_1, %c0_2, %9, %c0_3] : memref<1x20x8x128xf32, #tpu.memory_space<vmem>>, vector<1x1x8x128xf32>
    %11 = vector.shape_cast %10 : vector<1x1x8x128xf32> to vector<8x128xf32>
    %12 = vector.shape_cast %7 : vector<8x128xf32> to vector<1x1x8x128xf32>
    tpu.vector_store %arg3[%c0_1, %c0_2, %9, %c0_3], %12 {strides = array<i32>} : memref<1x20x8x128xf32, #tpu.memory_space<vmem>>, vector<1x1x8x128xf32>,
    %c0_4 = arith.constant 0 : index
    %c10 = arith.constant 10 : index
    %13 = arith.index_cast %1 : i32 to index
    %c0_5 = arith.constant 0 : index
    %14 = vector.load %arg3[%c0_4, %c10, %13, %c0_5] : memref<1x20x8x128xf32, #tpu.memory_space<vmem>>, vector<1x1x8x128xf32>
    %15 = vector.shape_cast %14 : vector<1x1x8x128xf32> to vector<8x128xf32>
    %16 = vector.shape_cast %8 : vector<8x128xf32> to vector<1x1x8x128xf32>
    tpu.vector_store %arg3[%c0_4, %c10, %13, %c0_5], %16 {strides = array<i32>} : memref<1x20x8x128xf32, #tpu.memory_space<vmem>>, vector<1x1x8x128xf32>,
    %17 = arith.mulf %7, %8 : vector<8x128xf32>
    %cst_6 = arith.constant 2.000000e+00 : f32
    %18 = vector.broadcast %cst_6 : f32 to vector<8x128xf32>
    %19 = arith.mulf %18, %17 : vector<8x128xf32>
    %20 = arith.mulf %8, %8 : vector<8x128xf32>
    %cst_7 = arith.constant 2.000000e+00 : f32
    %21 = vector.broadcast %cst_7 : f32 to vector<8x128xf32>
    %22 = arith.mulf %21, %20 : vector<8x128xf32>
    %cst_8 = arith.constant 1.000000e+00 : f32
    %23 = vector.broadcast %cst_8 : f32 to vector<8x128xf32>
    %24 = arith.subf %22, %23 : vector<8x128xf32>
    %c0_9 = arith.constant 0 : index
    %c1 = arith.constant 1 : index
    %25 = arith.index_cast %1 : i32 to index
    %c0_10 = arith.constant 0 : index
    %26 = vector.load %arg3[%c0_9, %c1, %25, %c0_10] : memref<1x20x8x128xf32, #tpu.memory_space<vmem>>, vector<1x1x8x128xf32>
    %27 = vector.shape_cast %26 : vector<1x1x8x128xf32> to vector<8x128xf32>
    %28 = vector.shape_cast %19 : vector<8x128xf32> to vector<1x1x8x128xf32>
    tpu.vector_store %arg3[%c0_9, %c1, %25, %c0_10], %28 {strides = array<i32>} : memref<1x20x8x128xf32, #tpu.memory_space<vmem>>, vector<1x1x8x128xf32>,
    %c0_11 = arith.constant 0 : index
    %c11 = arith.constant 11 : index
    %29 = arith.index_cast %1 : i32 to index
    %c0_12 = arith.constant 0 : index
    %30 = vector.load %arg3[%c0_11, %c11, %29, %c0_12] : memref<1x20x8x128xf32, #tpu.memory_space<vmem>>, vector<1x1x8x128xf32>
    %31 = vector.shape_cast %30 : vector<1x1x8x128xf32> to vector<8x128xf32>
    %32 = vector.shape_cast %24 : vector<8x128xf32> to vector<1x1x8x128xf32>
    tpu.vector_store %arg3[%c0_11, %c11, %29, %c0_12], %32 {strides = array<i32>} : memref<1x20x8x128xf32, #tpu.memory_space<vmem>>, vector<1x1x8x128xf32>,
    %33 = arith.mulf %19, %24 : vector<8x128xf32>
    %cst_13 = arith.constant 2.000000e+00 : f32
    %34 = vector.broadcast %cst_13 : f32 to vector<8x128xf32>
    %35 = arith.mulf %34, %33 : vector<8x128xf32>
    %36 = arith.mulf %24, %24 : vector<8x128xf32>
    %cst_14 = arith.constant 2.000000e+00 : f32
    %37 = vector.broadcast %cst_14 : f32 to vector<8x128xf32>
    %38 = arith.mulf %37, %36 : vector<8x128xf32>
    %cst_15 = arith.constant 1.000000e+00 : f32
    %39 = vector.broadcast %cst_15 : f32 to vector<8x128xf32>
    %40 = arith.subf %38, %39 : vector<8x128xf32>
    %c0_16 = arith.constant 0 : index
    %c2 = arith.constant 2 : index
    %41 = arith.index_cast %1 : i32 to index
    %c0_17 = arith.constant 0 : index
    %42 = vector.load %arg3[%c0_16, %c2, %41, %c0_17] : memref<1x20x8x128xf32, #tpu.memory_space<vmem>>, vector<1x1x8x128xf32>
    %43 = vector.shape_cast %42 : vector<1x1x8x128xf32> to vector<8x128xf32>
    %44 = vector.shape_cast %35 : vector<8x128xf32> to vector<1x1x8x128xf32>
    tpu.vector_store %arg3[%c0_16, %c2, %41, %c0_17], %44 {strides = array<i32>} : memref<1x20x8x128xf32, #tpu.memory_space<vmem>>, vector<1x1x8x128xf32>,
    %c0_18 = arith.constant 0 : index
    %c12 = arith.constant 12 : index
    %45 = arith.index_cast %1 : i32 to index
    %c0_19 = arith.constant 0 : index
    %46 = vector.load %arg3[%c0_18, %c12, %45, %c0_19] : memref<1x20x8x128xf32, #tpu.memory_space<vmem>>, vector<1x1x8x128xf32>
    %47 = vector.shape_cast %46 : vector<1x1x8x128xf32> to vector<8x128xf32>
    %48 = vector.shape_cast %40 : vector<8x128xf32> to vector<1x1x8x128xf32>
    tpu.vector_store %arg3[%c0_18, %c12, %45, %c0_19], %48 {strides = array<i32>} : memref<1x20x8x128xf32, #tpu.memory_space<vmem>>, vector<1x1x8x128xf32>,
    %49 = arith.mulf %35, %40 : vector<8x128xf32>
    %cst_20 = arith.constant 2.000000e+00 : f32
    %50 = vector.broadcast %cst_20 : f32 to vector<8x128xf32>
    %51 = arith.mulf %50, %49 : vector<8x128xf32>
    %52 = arith.mulf %40, %40 : vector<8x128xf32>
    %cst_21 = arith.constant 2.000000e+00 : f32
    %53 = vector.broadcast %cst_21 : f32 to vector<8x128xf32>
    %54 = arith.mulf %53, %52 : vector<8x128xf32>
    %cst_22 = arith.constant 1.000000e+00 : f32
    %55 = vector.broadcast %cst_22 : f32 to vector<8x128xf32>
    %56 = arith.subf %54, %55 : vector<8x128xf32>
    %c0_23 = arith.constant 0 : index
    %c3 = arith.constant 3 : index
    %57 = arith.index_cast %1 : i32 to index
    %c0_24 = arith.constant 0 : index
    %58 = vector.load %arg3[%c0_23, %c3, %57, %c0_24] : memref<1x20x8x128xf32, #tpu.memory_space<vmem>>, vector<1x1x8x128xf32>
    %59 = vector.shape_cast %58 : vector<1x1x8x128xf32> to vector<8x128xf32>
    %60 = vector.shape_cast %51 : vector<8x128xf32> to vector<1x1x8x128xf32>
    tpu.vector_store %arg3[%c0_23, %c3, %57, %c0_24], %60 {strides = array<i32>} : memref<1x20x8x128xf32, #tpu.memory_space<vmem>>, vector<1x1x8x128xf32>,
    %c0_25 = arith.constant 0 : index
    %c13 = arith.constant 13 : index
    %61 = arith.index_cast %1 : i32 to index
    %c0_26 = arith.constant 0 : index
    %62 = vector.load %arg3[%c0_25, %c13, %61, %c0_26] : memref<1x20x8x128xf32, #tpu.memory_space<vmem>>, vector<1x1x8x128xf32>
    %63 = vector.shape_cast %62 : vector<1x1x8x128xf32> to vector<8x128xf32>
    %64 = vector.shape_cast %56 : vector<8x128xf32> to vector<1x1x8x128xf32>
    tpu.vector_store %arg3[%c0_25, %c13, %61, %c0_26], %64 {strides = array<i32>} : memref<1x20x8x128xf32, #tpu.memory_space<vmem>>, vector<1x1x8x128xf32>,
    %65 = arith.mulf %51, %56 : vector<8x128xf32>
    %cst_27 = arith.constant 2.000000e+00 : f32
    %66 = vector.broadcast %cst_27 : f32 to vector<8x128xf32>
    %67 = arith.mulf %66, %65 : vector<8x128xf32>
    %68 = arith.mulf %56, %56 : vector<8x128xf32>
    %cst_28 = arith.constant 2.000000e+00 : f32
    %69 = vector.broadcast %cst_28 : f32 to vector<8x128xf32>
    %70 = arith.mulf %69, %68 : vector<8x128xf32>
    %cst_29 = arith.constant 1.000000e+00 : f32
    %71 = vector.broadcast %cst_29 : f32 to vector<8x128xf32>
    %72 = arith.subf %70, %71 : vector<8x128xf32>
    %c0_30 = arith.constant 0 : index
    %c4 = arith.constant 4 : index
    %73 = arith.index_cast %1 : i32 to index
    %c0_31 = arith.constant 0 : index
    %74 = vector.load %arg3[%c0_30, %c4, %73, %c0_31] : memref<1x20x8x128xf32, #tpu.memory_space<vmem>>, vector<1x1x8x128xf32>
    %75 = vector.shape_cast %74 : vector<1x1x8x128xf32> to vector<8x128xf32>
    %76 = vector.shape_cast %67 : vector<8x128xf32> to vector<1x1x8x128xf32>
    tpu.vector_store %arg3[%c0_30, %c4, %73, %c0_31], %76 {strides = array<i32>} : memref<1x20x8x128xf32, #tpu.memory_space<vmem>>, vector<1x1x8x128xf32>,
    %c0_32 = arith.constant 0 : index
    %c14 = arith.constant 14 : index
    %77 = arith.index_cast %1 : i32 to index
    %c0_33 = arith.constant 0 : index
    %78 = vector.load %arg3[%c0_32, %c14, %77, %c0_33] : memref<1x20x8x128xf32, #tpu.memory_space<vmem>>, vector<1x1x8x128xf32>
    %79 = vector.shape_cast %78 : vector<1x1x8x128xf32> to vector<8x128xf32>
    %80 = vector.shape_cast %72 : vector<8x128xf32> to vector<1x1x8x128xf32>
    tpu.vector_store %arg3[%c0_32, %c14, %77, %c0_33], %80 {strides = array<i32>} : memref<1x20x8x128xf32, #tpu.memory_space<vmem>>, vector<1x1x8x128xf32>,
    %cst_34 = arith.constant 100.530968 : f32
    %81 = vector.broadcast %cst_34 : f32 to vector<8x128xf32>
    %82 = arith.mulf %4, %81 : vector<8x128xf32>
    %83 = math.sin %82 : vector<8x128xf32>
    %84 = math.cos %82 : vector<8x128xf32>
    %c0_35 = arith.constant 0 : index
    %c5 = arith.constant 5 : index
    %85 = arith.index_cast %1 : i32 to index
    %c0_36 = arith.constant 0 : index
    %86 = vector.load %arg3[%c0_35, %c5, %85, %c0_36] : memref<1x20x8x128xf32, #tpu.memory_space<vmem>>, vector<1x1x8x128xf32>
    %87 = vector.shape_cast %86 : vector<1x1x8x128xf32> to vector<8x128xf32>
    %88 = vector.shape_cast %83 : vector<8x128xf32> to vector<1x1x8x128xf32>
    tpu.vector_store %arg3[%c0_35, %c5, %85, %c0_36], %88 {strides = array<i32>} : memref<1x20x8x128xf32, #tpu.memory_space<vmem>>, vector<1x1x8x128xf32>,
    %c0_37 = arith.constant 0 : index
    %c15 = arith.constant 15 : index
    %89 = arith.index_cast %1 : i32 to index
    %c0_38 = arith.constant 0 : index
    %90 = vector.load %arg3[%c0_37, %c15, %89, %c0_38] : memref<1x20x8x128xf32, #tpu.memory_space<vmem>>, vector<1x1x8x128xf32>
    %91 = vector.shape_cast %90 : vector<1x1x8x128xf32> to vector<8x128xf32>
    %92 = vector.shape_cast %84 : vector<8x128xf32> to vector<1x1x8x128xf32>
    tpu.vector_store %arg3[%c0_37, %c15, %89, %c0_38], %92 {strides = array<i32>} : memref<1x20x8x128xf32, #tpu.memory_space<vmem>>, vector<1x1x8x128xf32>,
    %93 = arith.mulf %83, %84 : vector<8x128xf32>
    %cst_39 = arith.constant 2.000000e+00 : f32
    %94 = vector.broadcast %cst_39 : f32 to vector<8x128xf32>
    %95 = arith.mulf %94, %93 : vector<8x128xf32>
    %96 = arith.mulf %84, %84 : vector<8x128xf32>
    %cst_40 = arith.constant 2.000000e+00 : f32
    %97 = vector.broadcast %cst_40 : f32 to vector<8x128xf32>
    %98 = arith.mulf %97, %96 : vector<8x128xf32>
    %cst_41 = arith.constant 1.000000e+00 : f32
    %99 = vector.broadcast %cst_41 : f32 to vector<8x128xf32>
    %100 = arith.subf %98, %99 : vector<8x128xf32>
    %c0_42 = arith.constant 0 : index
    %c6 = arith.constant 6 : index
    %101 = arith.index_cast %1 : i32 to index
    %c0_43 = arith.constant 0 : index
    %102 = vector.load %arg3[%c0_42, %c6, %101, %c0_43] : memref<1x20x8x128xf32, #tpu.memory_space<vmem>>, vector<1x1x8x128xf32>
    %103 = vector.shape_cast %102 : vector<1x1x8x128xf32> to vector<8x128xf32>
    %104 = vector.shape_cast %95 : vector<8x128xf32> to vector<1x1x8x128xf32>
    tpu.vector_store %arg3[%c0_42, %c6, %101, %c0_43], %104 {strides = array<i32>} : memref<1x20x8x128xf32, #tpu.memory_space<vmem>>, vector<1x1x8x128xf32>,
    %c0_44 = arith.constant 0 : index
    %c16 = arith.constant 16 : index
    %105 = arith.index_cast %1 : i32 to index
    %c0_45 = arith.constant 0 : index
    %106 = vector.load %arg3[%c0_44, %c16, %105, %c0_45] : memref<1x20x8x128xf32, #tpu.memory_space<vmem>>, vector<1x1x8x128xf32>
    %107 = vector.shape_cast %106 : vector<1x1x8x128xf32> to vector<8x128xf32>
    %108 = vector.shape_cast %100 : vector<8x128xf32> to vector<1x1x8x128xf32>
    tpu.vector_store %arg3[%c0_44, %c16, %105, %c0_45], %108 {strides = array<i32>} : memref<1x20x8x128xf32, #tpu.memory_space<vmem>>, vector<1x1x8x128xf32>,
    %109 = arith.mulf %95, %100 : vector<8x128xf32>
    %cst_46 = arith.constant 2.000000e+00 : f32
    %110 = vector.broadcast %cst_46 : f32 to vector<8x128xf32>
    %111 = arith.mulf %110, %109 : vector<8x128xf32>
    %112 = arith.mulf %100, %100 : vector<8x128xf32>
    %cst_47 = arith.constant 2.000000e+00 : f32
    %113 = vector.broadcast %cst_47 : f32 to vector<8x128xf32>
    %114 = arith.mulf %113, %112 : vector<8x128xf32>
    %cst_48 = arith.constant 1.000000e+00 : f32
    %115 = vector.broadcast %cst_48 : f32 to vector<8x128xf32>
    %116 = arith.subf %114, %115 : vector<8x128xf32>
    %c0_49 = arith.constant 0 : index
    %c7 = arith.constant 7 : index
    %117 = arith.index_cast %1 : i32 to index
    %c0_50 = arith.constant 0 : index
    %118 = vector.load %arg3[%c0_49, %c7, %117, %c0_50] : memref<1x20x8x128xf32, #tpu.memory_space<vmem>>, vector<1x1x8x128xf32>
    %119 = vector.shape_cast %118 : vector<1x1x8x128xf32> to vector<8x128xf32>
    %120 = vector.shape_cast %111 : vector<8x128xf32> to vector<1x1x8x128xf32>
    tpu.vector_store %arg3[%c0_49, %c7, %117, %c0_50], %120 {strides = array<i32>} : memref<1x20x8x128xf32, #tpu.memory_space<vmem>>, vector<1x1x8x128xf32>,
    %c0_51 = arith.constant 0 : index
    %c17 = arith.constant 17 : index
    %121 = arith.index_cast %1 : i32 to index
    %c0_52 = arith.constant 0 : index
    %122 = vector.load %arg3[%c0_51, %c17, %121, %c0_52] : memref<1x20x8x128xf32, #tpu.memory_space<vmem>>, vector<1x1x8x128xf32>
    %123 = vector.shape_cast %122 : vector<1x1x8x128xf32> to vector<8x128xf32>
    %124 = vector.shape_cast %116 : vector<8x128xf32> to vector<1x1x8x128xf32>
    tpu.vector_store %arg3[%c0_51, %c17, %121, %c0_52], %124 {strides = array<i32>} : memref<1x20x8x128xf32, #tpu.memory_space<vmem>>, vector<1x1x8x128xf32>,
    %125 = arith.mulf %111, %116 : vector<8x128xf32>
    %cst_53 = arith.constant 2.000000e+00 : f32
    %126 = vector.broadcast %cst_53 : f32 to vector<8x128xf32>
    %127 = arith.mulf %126, %125 : vector<8x128xf32>
    %128 = arith.mulf %116, %116 : vector<8x128xf32>
    %cst_54 = arith.constant 2.000000e+00 : f32
    %129 = vector.broadcast %cst_54 : f32 to vector<8x128xf32>
    %130 = arith.mulf %129, %128 : vector<8x128xf32>
    %cst_55 = arith.constant 1.000000e+00 : f32
    %131 = vector.broadcast %cst_55 : f32 to vector<8x128xf32>
    %132 = arith.subf %130, %131 : vector<8x128xf32>
    %c0_56 = arith.constant 0 : index
    %c8 = arith.constant 8 : index
    %133 = arith.index_cast %1 : i32 to index
    %c0_57 = arith.constant 0 : index
    %134 = vector.load %arg3[%c0_56, %c8, %133, %c0_57] : memref<1x20x8x128xf32, #tpu.memory_space<vmem>>, vector<1x1x8x128xf32>
    %135 = vector.shape_cast %134 : vector<1x1x8x128xf32> to vector<8x128xf32>
    %136 = vector.shape_cast %127 : vector<8x128xf32> to vector<1x1x8x128xf32>
    tpu.vector_store %arg3[%c0_56, %c8, %133, %c0_57], %136 {strides = array<i32>} : memref<1x20x8x128xf32, #tpu.memory_space<vmem>>, vector<1x1x8x128xf32>,
    %c0_58 = arith.constant 0 : index
    %c18 = arith.constant 18 : index
    %137 = arith.index_cast %1 : i32 to index
    %c0_59 = arith.constant 0 : index
    %138 = vector.load %arg3[%c0_58, %c18, %137, %c0_59] : memref<1x20x8x128xf32, #tpu.memory_space<vmem>>, vector<1x1x8x128xf32>
    %139 = vector.shape_cast %138 : vector<1x1x8x128xf32> to vector<8x128xf32>
    %140 = vector.shape_cast %132 : vector<8x128xf32> to vector<1x1x8x128xf32>
    tpu.vector_store %arg3[%c0_58, %c18, %137, %c0_59], %140 {strides = array<i32>} : memref<1x20x8x128xf32, #tpu.memory_space<vmem>>, vector<1x1x8x128xf32>,
    %141 = arith.mulf %127, %132 : vector<8x128xf32>
    %cst_60 = arith.constant 2.000000e+00 : f32
    %142 = vector.broadcast %cst_60 : f32 to vector<8x128xf32>
    %143 = arith.mulf %142, %141 : vector<8x128xf32>
    %144 = arith.mulf %132, %132 : vector<8x128xf32>
    %cst_61 = arith.constant 2.000000e+00 : f32
    %145 = vector.broadcast %cst_61 : f32 to vector<8x128xf32>
    %146 = arith.mulf %145, %144 : vector<8x128xf32>
    %cst_62 = arith.constant 1.000000e+00 : f32
    %147 = vector.broadcast %cst_62 : f32 to vector<8x128xf32>
    %148 = arith.subf %146, %147 : vector<8x128xf32>
    %c0_63 = arith.constant 0 : index
    %c9 = arith.constant 9 : index
    %149 = arith.index_cast %1 : i32 to index
    %c0_64 = arith.constant 0 : index
    %150 = vector.load %arg3[%c0_63, %c9, %149, %c0_64] : memref<1x20x8x128xf32, #tpu.memory_space<vmem>>, vector<1x1x8x128xf32>
    %151 = vector.shape_cast %150 : vector<1x1x8x128xf32> to vector<8x128xf32>
    %152 = vector.shape_cast %143 : vector<8x128xf32> to vector<1x1x8x128xf32>
    tpu.vector_store %arg3[%c0_63, %c9, %149, %c0_64], %152 {strides = array<i32>} : memref<1x20x8x128xf32, #tpu.memory_space<vmem>>, vector<1x1x8x128xf32>,
    %c0_65 = arith.constant 0 : index
    %c19 = arith.constant 19 : index
    %153 = arith.index_cast %1 : i32 to index
    %c0_66 = arith.constant 0 : index
    %154 = vector.load %arg3[%c0_65, %c19, %153, %c0_66] : memref<1x20x8x128xf32, #tpu.memory_space<vmem>>, vector<1x1x8x128xf32>
    %155 = vector.shape_cast %154 : vector<1x1x8x128xf32> to vector<8x128xf32>
    %156 = vector.shape_cast %148 : vector<8x128xf32> to vector<1x1x8x128xf32>
    tpu.vector_store %arg3[%c0_65, %c19, %153, %c0_66], %156 {strides = array<i32>} : memref<1x20x8x128xf32, #tpu.memory_space<vmem>>, vector<1x1x8x128xf32>,
    %c1_i32 = arith.constant 1 : i32
    return
  }
  func.func @transform_0(%arg0: i32, %arg1: i32) -> (i32, i32, i32) {
    %c0_i32 = arith.constant 0 : i32
    %c0_i32_0 = arith.constant 0 : i32
    return %arg0, %arg1, %c0_i32 : i32, i32, i32
  }
  func.func @transform_1(%arg0: i32, %arg1: i32) -> (i32, i32, i32, i32) {
    %c0_i32 = arith.constant 0 : i32
    %c0_i32_0 = arith.constant 0 : i32
    %c0_i32_1 = arith.constant 0 : i32
    return %arg0, %c0_i32, %arg1, %c0_i32_0 : i32, i32, i32, i32
  }
}

</mosaic_0001>

<llo_original>
// kernel: tpu_custom_call.1
$region0: #{tpu_custom_call.1}
  #allocation0 [shape = 'u32[]', space=smem, size = 0x4, offset = 0x4, fixed_abs, tag = 'smem constant byte address 0x4 - core index']
  #allocation1 [shape = 'u32[144,128]{1,0:T(1,128)}', space=vmem, size = 0x12000, scoped, tag = 'internal scratch']
  %s0 = inlined_call_operand.hbm [shape: f32[2,8,128], index: 0, kind: input, shape index: {}]
  %s1 = inlined_call_operand.hbm [shape: f32[2,20,8,128], index: 1, kind: output, shape index: {}]
  %s2 = sld [smem:[#allocation0]]
  $region41: #{tpu_custom_call.1} parent=0
    _
  %s4 = ssub.s32 1, %s2
  %s5 = scalar_select 0, %s4, %s2
  $region1: #{tpu_custom_call.1} parent=0
    #allocation2 [shape = 'u8[8192]{0}', space=vmem, size = 0x2000, scoped, tag = 'input window, operand 0']
    #allocation3 [shape = 's32[2]{0}', space=sflag, size = 0x8, scoped, tag = 'scoped memory for tpu_custom_call.1']
    #allocation4 [shape = 's32[2]{0}', space=sflag, size = 0x8, scoped, tag = 'scoped memory for tpu_custom_call.1']
    #allocation5 [shape = 'u8[163840]{0}', space=vmem, size = 0x28000, scoped, tag = 'output window, operand 0']
    %6 = vsyncpa [#allocation3], 0
    %s7 = scalar_lea.sflag [#allocation3], 1
    %8 = vsyncpa %s7, 0
    %9 = vsyncpa [#allocation4], 0
    %s10 = scalar_lea.sflag [#allocation4], 1
    %11 = vsyncpa %s10, 0
    loop: start=0, step=1, limit=4
    $region2: #{tpu_custom_call.1} parent=1 // loop_pre_header
      _
    $region3: #{tpu_custom_call.1} parent=1 // loop_header
      %s13 = sphi 0, %s17
      %p14 = scmp.ge.s32.totalorder %s13, 4
      %s20 = sphi 0, %s32
      %s21 = sphi 0, %s28
      %s22 = sphi 0, %s20
      %s23 = sphi 0, %s21
      %s24 = sphi 0, %s22
      %s25 = sphi 0, %s23
      %s37 = sphi 0, %s39
      %s40 = sphi 0, %s37
      %s41 = sphi 0, %s40
      %s57 = sphi 0, %s41
      %s65 = sphi 0, %s67
      %s68 = sphi 0, %s65
      %s69 = sphi 0, %s68
      %s85 = sphi 0, %s69
    $region4: #{tpu_custom_call.1} parent=1 // loop_header_branch
      %16 = sbr.rel (%p14) target = $region8
    $region5: #{tpu_custom_call.1} parent=1 // loop_body
      %s18 = ssub.s32 %s13, 1
      %s19 = ssub.s32 %s13, 2
      %s26 = sadd.s32 1, %s21
      %p27 = scmp.ge.s32.totalorder %s26, 1
      %s28 = scalar_select %p27, 0, %s26
      %s29 = sadd.s32 1, %s20
      %s30 = scalar_select %p27, %s29, %s20
      %p31 = scmp.ge.s32.totalorder %s30, 2
      %s32 = scalar_select %p31, 0, %s30
      %s33 = ssub.s32 %s20, %s32
      %s34 = ssub.s32 %s21, %s28
      %s35 = sor.u32 %s33, %s34
      %p36 = scmp.eq.s32.totalorder %s35, 0
      %s38 = sadd.s32 %s37, 1
      %s39 = scalar_select %p36, %s37, %s38
      %p42 = pneg %p36
      %p43 = scmp.eq.s32.totalorder %s13, 1
      %p44 = por %p42, %p43
      %p45 = scmp.ne.s32.totalorder %s37, %s40
      %p46 = scmp.eq.s32.totalorder %s13, 0
      %p47 = por %p45, %p46
      %p48 = scmp.ne.s32.totalorder %s37, %s40
      %p49 = scmp.eq.s32.totalorder %s18, 1
      %p50 = por %p48, %p49
      %p51 = scmp.ne.s32.totalorder %s40, %s41
      %p52 = scmp.eq.s32.totalorder %s18, 0
      %p53 = por %p51, %p52
      %p54 = scmp.ne.s32.totalorder %s40, %s41
      %p55 = scmp.eq.s32.totalorder %s19, 1
      %p56 = por %p54, %p55
      %p58 = scmp.ne.s32.totalorder %s41, %s57
      %p59 = scmp.eq.s32.totalorder %s19, 0
      %p60 = por %p58, %p59
      %s61 = ssub.s32 %s20, %s32
      %s62 = ssub.s32 %s21, %s28
      %s63 = sor.u32 %s61, %s62
      %p64 = scmp.eq.s32.totalorder %s63, 0
      %s66 = sadd.s32 %s65, 1
      %s67 = scalar_select %p64, %s65, %s66
      %p70 = pneg %p64
      %p71 = scmp.eq.s32.totalorder %s13, 1
      %p72 = por %p70, %p71
      %p73 = scmp.ne.s32.totalorder %s65, %s68
      %p74 = scmp.eq.s32.totalorder %s13, 0
      %p75 = por %p73, %p74
      %p76 = scmp.ne.s32.totalorder %s65, %s68
      %p77 = scmp.eq.s32.totalorder %s18, 1
      %p78 = por %p76, %p77
      %p79 = scmp.ne.s32.totalorder %s68, %s69
      %p80 = scmp.eq.s32.totalorder %s18, 0
      %p81 = por %p79, %p80
      %p82 = scmp.ne.s32.totalorder %s68, %s69
      %p83 = scmp.eq.s32.totalorder %s19, 1
      %p84 = por %p82, %p83
      %p86 = scmp.ne.s32.totalorder %s69, %s85
      %p87 = scmp.eq.s32.totalorder %s19, 0
      %p88 = por %p86, %p87
      %p89 = scmp.le.s32.totalorder 1, %s13
      %p90 = scmp.lt.s32.totalorder %s13, 3
      %p91 = pnand %p89, %p90
      %p92 = pneg %p91
      // Predicated region
      $region9: #{tpu_custom_call.1} parent=5 // pred_check
        _
      $region10: #{tpu_custom_call.1} parent=5 // pred_check_branch
        %94 = sbr.rel (%p91) target = $region12
      $region11: #{tpu_custom_call.1} parent=5 // pred_region
        %s95 = ssub.s32 %s13, 1
      $region12: #{tpu_custom_call.1} parent=5 // pred_fallthru
        _
      %p96 = scmp.lt.s32.totalorder %s13, 2
      // Predicated region
      $region13: #{tpu_custom_call.1} parent=5 // pred_check
        %p97 = pneg %p96
      $region14: #{tpu_custom_call.1} parent=5 // pred_check_branch
        %99 = sbr.rel (%p97) target = $region16
      $region15: #{tpu_custom_call.1} parent=5 // pred_region
        // Predicated region
        $region17: #{tpu_custom_call.1} parent=15 // pred_check
          %p100 = pneg %p47
        $region18: #{tpu_custom_call.1} parent=15 // pred_check_branch
          %102 = sbr.rel (%p100) target = $region20
        $region19: #{tpu_custom_call.1} parent=15 // pred_region
          %s103 = sand.u32 %s37, 1
          %s104 = scalar_lea.sflag [#allocation3], %s103
          %s105 = sand.u32 %s37, 1
          %s106 = smul.addr %s105, 8
          %s107 = scalar_lea.vmem [#allocation2], %s106
          %s109 = ssub.s32 128, 128
          %110 = vsyncadd %s104, %s109
          %s111 = sadd.s32 %s21, %s20
          %s112 = smul.addr %s111, 128
          %s113 = scalar_lea.hbm %s0, %s112
          %s115 = sshll.u32 %s107, 4
          %s116 = int_to_ptr.vmem [resolvable:$true] %s115
          %118 = dma.hbm_to_vmem [thread:$0]  %s113, 128, %s116, %s104
        $region20: #{tpu_custom_call.1} parent=15 // pred_fallthru
          _
      $region16: #{tpu_custom_call.1} parent=5 // pred_fallthru
        _
      %p119 = scmp.le.s32.totalorder 1, %s13
      %p120 = scmp.lt.s32.totalorder %s13, 3
      %p121 = pnand %p119, %p120
      %p122 = pneg %p121
      // Predicated region
      $region21: #{tpu_custom_call.1} parent=5 // pred_check
        _
      $region22: #{tpu_custom_call.1} parent=5 // pred_check_branch
        %124 = sbr.rel (%p121) target = $region24
      $region23: #{tpu_custom_call.1} parent=5 // pred_region
        %s125 = ssub.s32 %s13, 1
        %s126 = sand.u32 %s40, 1
        %s127 = scalar_lea.sflag [#allocation3], %s126
        %s128 = sand.u32 %s40, 1
        %s129 = smul.addr %s128, 8
        %s130 = scalar_lea.vmem [#allocation2], %s129
        // Predicated region
        $region25: #{tpu_custom_call.1} parent=23 // pred_check
          %p131 = pneg %p53
        $region26: #{tpu_custom_call.1} parent=23 // pred_check_branch
          %133 = sbr.rel (%p131) target = $region28
        $region27: #{tpu_custom_call.1} parent=23 // pred_region
          %134 = dma.done %s127, 128
        $region28: #{tpu_custom_call.1} parent=23 // pred_fallthru
          _
        %s135 = sand.u32 %s40, 1
        %s136 = scalar_lea.sflag [#allocation3], %s135
        %s137 = sand.u32 %s40, 1
        %s138 = smul.addr %s137, 8
        %s139 = scalar_lea.vmem [#allocation2], %s138
        %p140 = pneg %p53
        %p141 = pneg %p50
        %p142 = pneg %p81
        %p143 = pneg %p78
        %s144 = sand.u32 %s68, 1
        %s145 = scalar_lea.sflag [#allocation4], %s144
        %s146 = sand.u32 %s68, 1
        %s147 = smul.addr %s146, 160
        %s148 = scalar_lea.vmem [#allocation5], %s147
        %v149 = vld [vmem:[%s130] sm:$0xff]
        %v150 = vmul.f32 %v149, 3.1415927
        %v151 = vand.u32 2147483647, %v150
        %vm152 = vcmp.le.f32.partialorder %v151, 0.7853982
        %vm153 = vcmp.lt.s32.totalorder %v150, 0
        %v154 = vand.u32 %v150, 2139095040
        %v155 = vshrl.u32 %v154, 23
        %v156 = vsub.s32 %v155, 127
        %v157 = vand.u32 2147483647, %v150
        %v158 = vand.u32 %v157, 8388607
        %v159 = vor.u32 %v158, 8388608
        %v160 = vsub.s32 0, %v159
        %v161 = vadd.s32 %v156, 1
        %vm162 = vcmp.gt.s32.totalorder %v161, 0
        %v163 = vsel %vm162, %v161, 0
        %v164 = vshrl.u32 %v163, 5
        %v165 = vand.u32 %v163, 31
        %v166 = vsub.s32 32, %v165
        %v167 = vshrl.u32 683565275, %v166
        %v168 = vshll.u32 683565275, %v165
        %v169 = vshrl.u32 2475754826, %v166
        %v170 = vor.u32 %v168, %v169
        %v171 = vshll.u32 2475754826, %v165
        %v172 = vshrl.u32 2131351028, %v166
        %v173 = vor.u32 %v171, %v172
        %v174 = vshll.u32 2131351028, %v165
        %v175 = vshrl.u32 2102212464, %v166
        %v176 = vor.u32 %v174, %v175
        %v177 = vshll.u32 2102212464, %v165
        %v178 = vshrl.u32 920167782, %v166
        %v179 = vor.u32 %v177, %v178
        %v180 = vshll.u32 920167782, %v165
        %v181 = vshrl.u32 1326507024, %v166
        %v182 = vor.u32 %v180, %v181
        %vm183 = vcmp.lt.s32.totalorder %v164, 1
        %vm184 = vcmp.lt.s32.totalorder %v164, 2
        %vm185 = vcmp.lt.s32.totalorder %v164, 3
        %vm186 = vcmp.lt.s32.totalorder %v164, 4
        %v187 = vsel %vm183, %v167, %v170
        %v188 = vsel %vm186, %v176, 2102212464
        %v189 = vsel %vm185, %v173, %v188
        %v190 = vsel %vm184, %v187, %v189
        %v191 = vsel %vm183, %v170, %v173
        %v192 = vsel %vm186, %v179, 920167782
        %v193 = vsel %vm185, %v176, %v192
        %v194 = vsel %vm184, %v191, %v193
        %v195 = vsel %vm183, %v173, %v176
        %v196 = vsel %vm186, %v182, 1326507024
        %v197 = vsel %vm185, %v179, %v196
        %v198 = vsel %vm184, %v195, %v197
        %v199 = vshll.u32 %v159, 8
        %v200 = vmul.u32.u64.compose %v199, %v198
        %v201 = vextract.low.u32 %v200
        %v202 = vextract.high.u32 %v200
        %v203 = vmul.u32.u64.compose %v199, %v194
        %v204 = vextract.low.u32 %v203
        %v205 = vextract.high.u32 %v203
        %v206 = vmul.u32 %v199, %v190
        %v207 = vadd.s32 %v202, %v204
        %vm208 = vc.u32 %v202, %v204
        %v209 = vadd.s32 %v205, 1
        %v210 = vsel %vm208, %v209, %v205
        %v211 = vadd.s32 %v206, %v210
        %v212 = vadd.s32 %v211, 536870912
        %v213 = vshrl.u32 %v212, 30
        %v214 = vshll.u32 %v213, 30
        %v215 = vsub.s32 %v211, %v214
        %vm216 = vcmp.lt.s32.totalorder %v215, 0
        %v217 = vsub.s32 0, %v215
        %v218 = vsel %vm216, %v217, %v215
        %v219 = vclz %v218
        %v220 = vsub.s32 %v219, 2
        %vm221 = vcmp.gt.s32.totalorder 0, %v220
        %v222 = vsel %vm221, 0, %v220
        %v223 = vsub.s32 32, %v222
        %v224 = vshll.u32 %v215, %v222
        %v225 = vshrl.u32 %v207, %v223
        %v226 = vor.u32 %v224, %v225
        %v227 = vsub.s32 4294967266, %v222
        %v228 = vadd.s32 %v227, 127
        %v229 = vshll.u32 %v228, 23
        %v230 = vor.u32 4788187, %v229
        %v231 = vand.u32 2147483647, %v230
        %v233 = vcvt.s32.f32 %v226
        %v234 = vmul.f32 %v233, %v231
        %v235 = vxor.u32 %v234, 2147483648
        %v236 = vsel %vm153, %v235, %v234
        %v237 = vsub.s32 4, %v213
        %v238 = vsel %vm153, %v237, %v213
        %v239 = vsel %vm152, %v150, %v236
        %v240 = vsel %vm152, 0, %v238
        %v241 = vcosq.f32.pop %v239
        %v242 = vsinq.f32.pop %v239
        %vm243 = vweird.f32 %v150
        %v244 = vadd.s32 %v240, 3
        %v245 = vand.u32 %v244, 3
        %vm246 = vcmp.lt.s32.totalorder %v245, 2
        %vm247 = vcmp.eq.s32.totalorder %v245, 0
        %v248 = vxor.u32 %v242, 2147483648
        %v249 = vsel %vm247, %v241, %v248
        %vm250 = vcmp.eq.s32.totalorder %v245, 2
        %v251 = vxor.u32 %v241, 2147483648
        %v252 = vsel %vm250, %v251, %v242
        %v253 = vsel %vm246, %v249, %v252
        %v254 = vsel %vm243, nan, %v253
        %v255 = vand.u32 2147483647, %v150
        %vm256 = vcmp.le.f32.partialorder %v255, 0.7853982
        %vm257 = vcmp.lt.s32.totalorder %v150, 0
        %v258 = vand.u32 %v150, 2139095040
        %v259 = vshrl.u32 %v258, 23
        %v260 = vsub.s32 %v259, 127
        %v261 = vand.u32 2147483647, %v150
        %v262 = vand.u32 %v261, 8388607
        %v263 = vor.u32 %v262, 8388608
        %v264 = vsub.s32 0, %v263
        %v265 = vadd.s32 %v260, 1
        %vm266 = vcmp.gt.s32.totalorder %v265, 0
        %v267 = vsel %vm266, %v265, 0
        %v268 = vshrl.u32 %v267, 5
        %v269 = vand.u32 %v267, 31
        %v270 = vsub.s32 32, %v269
        %v271 = vshrl.u32 683565275, %v270
        %v272 = vshll.u32 683565275, %v269
        %v273 = vshrl.u32 2475754826, %v270
        %v274 = vor.u32 %v272, %v273
        %v275 = vshll.u32 2475754826, %v269
        %v276 = vshrl.u32 2131351028, %v270
        %v277 = vor.u32 %v275, %v276
        %v278 = vshll.u32 2131351028, %v269
        %v279 = vshrl.u32 2102212464, %v270
        %v280 = vor.u32 %v278, %v279
        %v281 = vshll.u32 2102212464, %v269
        %v282 = vshrl.u32 920167782, %v270
        %v283 = vor.u32 %v281, %v282
        %v284 = vshll.u32 920167782, %v269
        %v285 = vshrl.u32 1326507024, %v270
        %v286 = vor.u32 %v284, %v285
        %vm287 = vcmp.lt.s32.totalorder %v268, 1
        %vm288 = vcmp.lt.s32.totalorder %v268, 2
        %vm289 = vcmp.lt.s32.totalorder %v268, 3
        %vm290 = vcmp.lt.s32.totalorder %v268, 4
        %v291 = vsel %vm287, %v271, %v274
        %v292 = vsel %vm290, %v280, 2102212464
        %v293 = vsel %vm289, %v277, %v292
        %v294 = vsel %vm288, %v291, %v293
        %v295 = vsel %vm287, %v274, %v277
        %v296 = vsel %vm290, %v283, 920167782
        %v297 = vsel %vm289, %v280, %v296
        %v298 = vsel %vm288, %v295, %v297
        %v299 = vsel %vm287, %v277, %v280
        %v300 = vsel %vm290, %v286, 1326507024
        %v301 = vsel %vm289, %v283, %v300
        %v302 = vsel %vm288, %v299, %v301
        %v303 = vshll.u32 %v263, 8
        %v304 = vmul.u32.u64.compose %v303, %v302
        %v305 = vextract.low.u32 %v304
        %v306 = vextract.high.u32 %v304
        %v307 = vmul.u32.u64.compose %v303, %v298
        %v308 = vextract.low.u32 %v307
        %v309 = vextract.high.u32 %v307
        %v310 = vmul.u32 %v303, %v294
        %v311 = vadd.s32 %v306, %v308
        %vm312 = vc.u32 %v306, %v308
        %v313 = vadd.s32 %v309, 1
        %v314 = vsel %vm312, %v313, %v309
        %v315 = vadd.s32 %v310, %v314
        %v316 = vadd.s32 %v315, 536870912
        %v317 = vshrl.u32 %v316, 30
        %v318 = vshll.u32 %v317, 30
        %v319 = vsub.s32 %v315, %v318
        %vm320 = vcmp.lt.s32.totalorder %v319, 0
        %v321 = vsub.s32 0, %v319
        %v322 = vsel %vm320, %v321, %v319
        %v323 = vclz %v322
        %v324 = vsub.s32 %v323, 2
        %vm325 = vcmp.gt.s32.totalorder 0, %v324
        %v326 = vsel %vm325, 0, %v324
        %v327 = vsub.s32 32, %v326
        %v328 = vshll.u32 %v319, %v326
        %v329 = vshrl.u32 %v311, %v327
        %v330 = vor.u32 %v328, %v329
        %v331 = vsub.s32 4294967266, %v326
        %v332 = vadd.s32 %v331, 127
        %v333 = vshll.u32 %v332, 23
        %v334 = vor.u32 4788187, %v333
        %v335 = vand.u32 2147483647, %v334
        %v337 = vcvt.s32.f32 %v330
        %v338 = vmul.f32 %v337, %v335
        %v339 = vxor.u32 %v338, 2147483648
        %v340 = vsel %vm257, %v339, %v338
        %v341 = vsub.s32 4, %v317
        %v342 = vsel %vm257, %v341, %v317
        %v343 = vsel %vm256, %v150, %v340
        %v344 = vsel %vm256, 0, %v342
        %v345 = vcosq.f32.pop %v343
        %v346 = vsinq.f32.pop %v343
        %vm347 = vweird.f32 %v150
        %v348 = vand.u32 %v344, 3
        %vm349 = vcmp.lt.s32.totalorder %v348, 2
        %vm350 = vcmp.eq.s32.totalorder %v348, 0
        %v351 = vxor.u32 %v346, 2147483648
        %v352 = vsel %vm350, %v345, %v351
        %vm353 = vcmp.eq.s32.totalorder %v348, 2
        %v354 = vxor.u32 %v345, 2147483648
        %v355 = vsel %vm353, %v354, %v346
        %v356 = vsel %vm349, %v352, %v355
        %v357 = vsel %vm347, nan, %v356
        %358 = vst [vmem:[%s148] sm:$0xff] %v254
        %s359 = sadd.s32 0, 80
        %s360 = scalar_lea.vmem %s148, %s359 [#allocation5]
        %361 = vst [vmem:[%s360] sm:$0xff] %v357
        %v362 = vmul.f32 %v254, %v357
        %v363 = vmul.f32 %v362, 2.0
        %v364 = vmul.f32 %v357, %v357
        %v365 = vmul.f32 %v364, 2.0
        %v366 = vsub.f32 %v365, 1.0
        %s367 = sadd.s32 0, 8
        %s368 = scalar_lea.vmem %s148, %s367 [#allocation5]
        %369 = vst [vmem:[%s368] sm:$0xff] %v363
        %s370 = sadd.s32 0, 88
        %s371 = scalar_lea.vmem %s148, %s370 [#allocation5]
        %372 = vst [vmem:[%s371] sm:$0xff] %v366
        %v373 = vmul.f32 %v363, %v366
        %v374 = vmul.f32 %v373, 2.0
        %v375 = vmul.f32 %v366, %v366
        %v376 = vmul.f32 %v375, 2.0
        %v377 = vsub.f32 %v376, 1.0
        %s378 = sadd.s32 0, 16
        %s379 = scalar_lea.vmem %s148, %s378 [#allocation5]
        %380 = vst [vmem:[%s379] sm:$0xff] %v374
        %s381 = sadd.s32 0, 96
        %s382 = scalar_lea.vmem %s148, %s381 [#allocation5]
        %383 = vst [vmem:[%s382] sm:$0xff] %v377
        %v384 = vmul.f32 %v374, %v377
        %v385 = vmul.f32 %v384, 2.0
        %v386 = vmul.f32 %v377, %v377
        %v387 = vmul.f32 %v386, 2.0
        %v388 = vsub.f32 %v387, 1.0
        %s389 = sadd.s32 0, 24
        %s390 = scalar_lea.vmem %s148, %s389 [#allocation5]
        %391 = vst [vmem:[%s390] sm:$0xff] %v385
        %s392 = sadd.s32 0, 104
        %s393 = scalar_lea.vmem %s148, %s392 [#allocation5]
        %394 = vst [vmem:[%s393] sm:$0xff] %v388
        %v395 = vmul.f32 %v385, %v388
        %v396 = vmul.f32 %v395, 2.0
        %v397 = vmul.f32 %v388, %v388
        %v398 = vmul.f32 %v397, 2.0
        %v399 = vsub.f32 %v398, 1.0
        %s400 = sadd.s32 0, 32
        %s401 = scalar_lea.vmem %s148, %s400 [#allocation5]
        %402 = vst [vmem:[%s401] sm:$0xff] %v396
        %s403 = sadd.s32 0, 112
        %s404 = scalar_lea.vmem %s148, %s403 [#allocation5]
        %405 = vst [vmem:[%s404] sm:$0xff] %v399
        %v406 = vmul.f32 %v149, 100.53097
        %v407 = vand.u32 2147483647, %v406
        %vm408 = vcmp.le.f32.partialorder %v407, 0.7853982
        %vm409 = vcmp.lt.s32.totalorder %v406, 0
        %v410 = vand.u32 %v406, 2139095040
        %v411 = vshrl.u32 %v410, 23
        %v412 = vsub.s32 %v411, 127
        %v413 = vand.u32 2147483647, %v406
        %v414 = vand.u32 %v413, 8388607
        %v415 = vor.u32 %v414, 8388608
        %v416 = vsub.s32 0, %v415
        %v417 = vadd.s32 %v412, 1
        %vm418 = vcmp.gt.s32.totalorder %v417, 0
        %v419 = vsel %vm418, %v417, 0
        %v420 = vshrl.u32 %v419, 5
        %v421 = vand.u32 %v419, 31
        %v422 = vsub.s32 32, %v421
        %v423 = vshrl.u32 683565275, %v422
        %v424 = vshll.u32 683565275, %v421
        %v425 = vshrl.u32 2475754826, %v422
        %v426 = vor.u32 %v424, %v425
        %v427 = vshll.u32 2475754826, %v421
        %v428 = vshrl.u32 2131351028, %v422
        %v429 = vor.u32 %v427, %v428
        %v430 = vshll.u32 2131351028, %v421
        %v431 = vshrl.u32 2102212464, %v422
        %v432 = vor.u32 %v430, %v431
        %v433 = vshll.u32 2102212464, %v421
        %v434 = vshrl.u32 920167782, %v422
        %v435 = vor.u32 %v433, %v434
        %v436 = vshll.u32 920167782, %v421
        %v437 = vshrl.u32 1326507024, %v422
        %v438 = vor.u32 %v436, %v437
        %vm439 = vcmp.lt.s32.totalorder %v420, 1
        %vm440 = vcmp.lt.s32.totalorder %v420, 2
        %vm441 = vcmp.lt.s32.totalorder %v420, 3
        %vm442 = vcmp.lt.s32.totalorder %v420, 4
        %v443 = vsel %vm439, %v423, %v426
        %v444 = vsel %vm442, %v432, 2102212464
        %v445 = vsel %vm441, %v429, %v444
        %v446 = vsel %vm440, %v443, %v445
        %v447 = vsel %vm439, %v426, %v429
        %v448 = vsel %vm442, %v435, 920167782
        %v449 = vsel %vm441, %v432, %v448
        %v450 = vsel %vm440, %v447, %v449
        %v451 = vsel %vm439, %v429, %v432
        %v452 = vsel %vm442, %v438, 1326507024
        %v453 = vsel %vm441, %v435, %v452
        %v454 = vsel %vm440, %v451, %v453
        %v455 = vshll.u32 %v415, 8
        %v456 = vmul.u32.u64.compose %v455, %v454
        %v457 = vextract.low.u32 %v456
        %v458 = vextract.high.u32 %v456
        %v459 = vmul.u32.u64.compose %v455, %v450
        %v460 = vextract.low.u32 %v459
        %v461 = vextract.high.u32 %v459
        %v462 = vmul.u32 %v455, %v446
        %v463 = vadd.s32 %v458, %v460
        %vm464 = vc.u32 %v458, %v460
        %v465 = vadd.s32 %v461, 1
        %v466 = vsel %vm464, %v465, %v461
        %v467 = vadd.s32 %v462, %v466
        %v468 = vadd.s32 %v467, 536870912
        %v469 = vshrl.u32 %v468, 30
        %v470 = vshll.u32 %v469, 30
        %v471 = vsub.s32 %v467, %v470
        %vm472 = vcmp.lt.s32.totalorder %v471, 0
        %v473 = vsub.s32 0, %v471
        %v474 = vsel %vm472, %v473, %v471
        %v475 = vclz %v474
        %v476 = vsub.s32 %v475, 2
        %vm477 = vcmp.gt.s32.totalorder 0, %v476
        %v478 = vsel %vm477, 0, %v476
        %v479 = vsub.s32 32, %v478
        %v480 = vshll.u32 %v471, %v478
        %v481 = vshrl.u32 %v463, %v479
        %v482 = vor.u32 %v480, %v481
        %v483 = vsub.s32 4294967266, %v478
        %v484 = vadd.s32 %v483, 127
        %v485 = vshll.u32 %v484, 23
        %v486 = vor.u32 4788187, %v485
        %v487 = vand.u32 2147483647, %v486
        %v489 = vcvt.s32.f32 %v482
        %v490 = vmul.f32 %v489, %v487
        %v491 = vxor.u32 %v490, 2147483648
        %v492 = vsel %vm409, %v491, %v490
        %v493 = vsub.s32 4, %v469
        %v494 = vsel %vm409, %v493, %v469
        %v495 = vsel %vm408, %v406, %v492
        %v496 = vsel %vm408, 0, %v494
        %v497 = vcosq.f32.pop %v495
        %v498 = vsinq.f32.pop %v495
        %vm499 = vweird.f32 %v406
        %v500 = vadd.s32 %v496, 3
        %v501 = vand.u32 %v500, 3
        %vm502 = vcmp.lt.s32.totalorder %v501, 2
        %vm503 = vcmp.eq.s32.totalorder %v501, 0
        %v504 = vxor.u32 %v498, 2147483648
        %v505 = vsel %vm503, %v497, %v504
        %vm506 = vcmp.eq.s32.totalorder %v501, 2
        %v507 = vxor.u32 %v497, 2147483648
        %v508 = vsel %vm506, %v507, %v498
        %v509 = vsel %vm502, %v505, %v508
        %v510 = vsel %vm499, nan, %v509
        %v511 = vand.u32 2147483647, %v406
        %vm512 = vcmp.le.f32.partialorder %v511, 0.7853982
        %vm513 = vcmp.lt.s32.totalorder %v406, 0
        %v514 = vand.u32 %v406, 2139095040
        %v515 = vshrl.u32 %v514, 23
        %v516 = vsub.s32 %v515, 127
        %v517 = vand.u32 2147483647, %v406
        %v518 = vand.u32 %v517, 8388607
        %v519 = vor.u32 %v518, 8388608
        %v520 = vsub.s32 0, %v519
        %v521 = vadd.s32 %v516, 1
        %vm522 = vcmp.gt.s32.totalorder %v521, 0
        %v523 = vsel %vm522, %v521, 0
        %v524 = vshrl.u32 %v523, 5
        %v525 = vand.u32 %v523, 31
        %v526 = vsub.s32 32, %v525
        %v527 = vshrl.u32 683565275, %v526
        %v528 = vshll.u32 683565275, %v525
        %v529 = vshrl.u32 2475754826, %v526
        %v530 = vor.u32 %v528, %v529
        %v531 = vshll.u32 2475754826, %v525
        %v532 = vshrl.u32 2131351028, %v526
        %v533 = vor.u32 %v531, %v532
        %v534 = vshll.u32 2131351028, %v525
        %v535 = vshrl.u32 2102212464, %v526
        %v536 = vor.u32 %v534, %v535
        %v537 = vshll.u32 2102212464, %v525
        %v538 = vshrl.u32 920167782, %v526
        %v539 = vor.u32 %v537, %v538
        %v540 = vshll.u32 920167782, %v525
        %v541 = vshrl.u32 1326507024, %v526
        %v542 = vor.u32 %v540, %v541
        %vm543 = vcmp.lt.s32.totalorder %v524, 1
        %vm544 = vcmp.lt.s32.totalorder %v524, 2
        %vm545 = vcmp.lt.s32.totalorder %v524, 3
        %vm546 = vcmp.lt.s32.totalorder %v524, 4
        %v547 = vsel %vm543, %v527, %v530
        %v548 = vsel %vm546, %v536, 2102212464
        %v549 = vsel %vm545, %v533, %v548
        %v550 = vsel %vm544, %v547, %v549
        %v551 = vsel %vm543, %v530, %v533
        %v552 = vsel %vm546, %v539, 920167782
        %v553 = vsel %vm545, %v536, %v552
        %v554 = vsel %vm544, %v551, %v553
        %v555 = vsel %vm543, %v533, %v536
        %v556 = vsel %vm546, %v542, 1326507024
        %v557 = vsel %vm545, %v539, %v556
        %v558 = vsel %vm544, %v555, %v557
        %v559 = vshll.u32 %v519, 8
        %v560 = vmul.u32.u64.compose %v559, %v558
        %v561 = vextract.low.u32 %v560
        %v562 = vextract.high.u32 %v560
        %v563 = vmul.u32.u64.compose %v559, %v554
        %v564 = vextract.low.u32 %v563
        %v565 = vextract.high.u32 %v563
        %v566 = vmul.u32 %v559, %v550
        %v567 = vadd.s32 %v562, %v564
        %vm568 = vc.u32 %v562, %v564
        %v569 = vadd.s32 %v565, 1
        %v570 = vsel %vm568, %v569, %v565
        %v571 = vadd.s32 %v566, %v570
        %v572 = vadd.s32 %v571, 536870912
        %v573 = vshrl.u32 %v572, 30
        %v574 = vshll.u32 %v573, 30
        %v575 = vsub.s32 %v571, %v574
        %vm576 = vcmp.lt.s32.totalorder %v575, 0
        %v577 = vsub.s32 0, %v575
        %v578 = vsel %vm576, %v577, %v575
        %v579 = vclz %v578
        %v580 = vsub.s32 %v579, 2
        %vm581 = vcmp.gt.s32.totalorder 0, %v580
        %v582 = vsel %vm581, 0, %v580
        %v583 = vsub.s32 32, %v582
        %v584 = vshll.u32 %v575, %v582
        %v585 = vshrl.u32 %v567, %v583
        %v586 = vor.u32 %v584, %v585
        %v587 = vsub.s32 4294967266, %v582
        %v588 = vadd.s32 %v587, 127
        %v589 = vshll.u32 %v588, 23
        %v590 = vor.u32 4788187, %v589
        %v591 = vand.u32 2147483647, %v590
        %v593 = vcvt.s32.f32 %v586
        %v594 = vmul.f32 %v593, %v591
        %v595 = vxor.u32 %v594, 2147483648
        %v596 = vsel %vm513, %v595, %v594
        %v597 = vsub.s32 4, %v573
        %v598 = vsel %vm513, %v597, %v573
        %v599 = vsel %vm512, %v406, %v596
        %v600 = vsel %vm512, 0, %v598
        %v601 = vcosq.f32.pop %v599
        %v602 = vsinq.f32.pop %v599
        %vm603 = vweird.f32 %v406
        %v604 = vand.u32 %v600, 3
        %vm605 = vcmp.lt.s32.totalorder %v604, 2
        %vm606 = vcmp.eq.s32.totalorder %v604, 0
        %v607 = vxor.u32 %v602, 2147483648
        %v608 = vsel %vm606, %v601, %v607
        %vm609 = vcmp.eq.s32.totalorder %v604, 2
        %v610 = vxor.u32 %v601, 2147483648
        %v611 = vsel %vm609, %v610, %v602
        %v612 = vsel %vm605, %v608, %v611
        %v613 = vsel %vm603, nan, %v612
        %s614 = sadd.s32 0, 40
        %s615 = scalar_lea.vmem %s148, %s614 [#allocation5]
        %616 = vst [vmem:[%s615] sm:$0xff] %v510
        %s617 = sadd.s32 0, 120
        %s618 = scalar_lea.vmem %s148, %s617 [#allocation5]
        %619 = vst [vmem:[%s618] sm:$0xff] %v613
        %v620 = vmul.f32 %v510, %v613
        %v621 = vmul.f32 %v620, 2.0
        %v622 = vmul.f32 %v613, %v613
        %v623 = vmul.f32 %v622, 2.0
        %v624 = vsub.f32 %v623, 1.0
        %s625 = sadd.s32 0, 48
        %s626 = scalar_lea.vmem %s148, %s625 [#allocation5]
        %627 = vst [vmem:[%s626] sm:$0xff] %v621
        %s628 = sadd.s32 0, 128
        %s629 = scalar_lea.vmem %s148, %s628 [#allocation5]
        %630 = vst [vmem:[%s629] sm:$0xff] %v624
        %v631 = vmul.f32 %v621, %v624
        %v632 = vmul.f32 %v631, 2.0
        %v633 = vmul.f32 %v624, %v624
        %v634 = vmul.f32 %v633, 2.0
        %v635 = vsub.f32 %v634, 1.0
        %s636 = sadd.s32 0, 56
        %s637 = scalar_lea.vmem %s148, %s636 [#allocation5]
        %638 = vst [vmem:[%s637] sm:$0xff] %v632
        %s639 = sadd.s32 0, 136
        %s640 = scalar_lea.vmem %s148, %s639 [#allocation5]
        %641 = vst [vmem:[%s640] sm:$0xff] %v635
        %v642 = vmul.f32 %v632, %v635
        %v643 = vmul.f32 %v642, 2.0
        %v644 = vmul.f32 %v635, %v635
        %v645 = vmul.f32 %v644, 2.0
        %v646 = vsub.f32 %v645, 1.0
        %s647 = sadd.s32 0, 64
        %s648 = scalar_lea.vmem %s148, %s647 [#allocation5]
        %649 = vst [vmem:[%s648] sm:$0xff] %v643
        %s650 = sadd.s32 0, 144
        %s651 = scalar_lea.vmem %s148, %s650 [#allocation5]
        %652 = vst [vmem:[%s651] sm:$0xff] %v646
        %v653 = vmul.f32 %v643, %v646
        %v654 = vmul.f32 %v653, 2.0
        %v655 = vmul.f32 %v646, %v646
        %v656 = vmul.f32 %v655, 2.0
        %v657 = vsub.f32 %v656, 1.0
        %s658 = sadd.s32 0, 72
        %s659 = scalar_lea.vmem %s148, %s658 [#allocation5]
        %660 = vst [vmem:[%s659] sm:$0xff] %v654
        %s661 = sadd.s32 0, 152
        %s662 = scalar_lea.vmem %s148, %s661 [#allocation5]
        %663 = vst [vmem:[%s662] sm:$0xff] %v657
        %s664 = sand.u32 %s68, 1
        %s665 = scalar_lea.sflag [#allocation4], %s664
        %s666 = sand.u32 %s68, 1
        %s667 = smul.addr %s666, 160
        %s668 = scalar_lea.vmem [#allocation5], %s667
        // Predicated region
        $region29: #{tpu_custom_call.1} parent=23 // pred_check
          %p669 = pneg %p78
        $region30: #{tpu_custom_call.1} parent=23 // pred_check_branch
          %671 = sbr.rel (%p669) target = $region32
        $region31: #{tpu_custom_call.1} parent=23 // pred_region
          %s673 = ssub.s32 2560, 2560
          %674 = vsyncadd %s665, %s673
          %s675 = smul.addr %s22, 20
          %s676 = sadd.s32 %s23, %s675
          %s677 = smul.addr %s676, 128
          %s678 = scalar_lea.hbm %s1, %s677
          %s679 = sshll.u32 %s668, 4
          %s680 = int_to_ptr.vmem [resolvable:$true] %s679
          %685 = dma.vmem_to_hbm [thread:$0]  %s680, 2560, %s678, %s665, 128, 128, 8
        $region32: #{tpu_custom_call.1} parent=23 // pred_fallthru
          _
      $region24: #{tpu_custom_call.1} parent=5 // pred_fallthru
        _
      %p686 = scmp.le.s32.totalorder 2, %s13
      // Predicated region
      $region33: #{tpu_custom_call.1} parent=5 // pred_check
        %p687 = pneg %p686
      $region34: #{tpu_custom_call.1} parent=5 // pred_check_branch
        %689 = sbr.rel (%p687) target = $region36
      $region35: #{tpu_custom_call.1} parent=5 // pred_region
        %s690 = ssub.s32 %s13, 2
        // Predicated region
        $region37: #{tpu_custom_call.1} parent=35 // pred_check
          %p691 = pneg %p84
        $region38: #{tpu_custom_call.1} parent=35 // pred_check_branch
          %693 = sbr.rel (%p691) target = $region40
        $region39: #{tpu_custom_call.1} parent=35 // pred_region
          %s694 = sand.u32 %s69, 1
          %s695 = scalar_lea.sflag [#allocation4], %s694
          %s696 = sand.u32 %s69, 1
          %s697 = smul.addr %s696, 160
          %s698 = scalar_lea.vmem [#allocation5], %s697
          %699 = dma.done %s695, 2560
        $region40: #{tpu_custom_call.1} parent=35 // pred_fallthru
          _
      $region36: #{tpu_custom_call.1} parent=5 // pred_fallthru
        _
    $region6: #{tpu_custom_call.1} parent=1 // loop_footer
      %s17 = sadd.s32 1, %s13
    $region7: #{tpu_custom_call.1} parent=1 // loop_footer_branch
      %12 = sbr.rel target = $region3
    $region8: #{tpu_custom_call.1} parent=1 // loop_exit
      _
    %700 = vsyncpa [#allocation3], 1
    %s701 = scalar_lea.sflag [#allocation3], 1
    %702 = vsyncpa %s701, 1
    %703 = vsyncpa [#allocation4], 1
    %s704 = scalar_lea.sflag [#allocation4], 1
    %705 = vsyncpa %s704, 1

</llo_original>
